<compile_context>
chip_gen: v6e
topology: v6e:2x2x1
jax: 0.10.0
libtpu: 0.0.40
codegen_flags: <defaults>
</compile_context>

<pallas_src>
import functools

import jax
import jax.numpy as jnp
from jax.experimental import pallas as pl
from jax.experimental.pallas import tpu as pltpu


def _treat_linear_kernel(x_ref, w_ref, b_ref, o_ref, *, islastlayer, compute_dtype):
    """One batch tile.

    x_ref : (TM, 1+ind) f32   -- column 0 is the treatment scalar
    w_ref : (1+ind, outd)     -- row 0 is treat_weight, rows 1: are weight
    b_ref : (1, outd)   f32
    o_ref : (TM, outd) if islastlayer else (TM, 1+outd)
    """
    x = x_ref[...]
    # Single MXU matmul covers both the feature matmul and the treat term.
    acc = jnp.dot(x.astype(compute_dtype), w_ref[...],
                  preferred_element_type=jnp.float32)
    out = jnp.maximum(acc + b_ref[...], 0.0)          # bias + ReLU in f32
    if islastlayer:
        o_ref[...] = out.astype(o_ref.dtype)
    else:
        # Re-attach the (exact, f32) treat column in-register; avoids a
        # separate wrapper-side concatenate (extra HBM read+write).
        treat = x[:, 0:1].astype(jnp.float32)
        o_ref[...] = jnp.concatenate([treat, out], axis=1).astype(o_ref.dtype)


def treat_linear_forward(x, weight, treat_weight, bias, *, islastlayer=0,
                         compute_dtype=jnp.float32, tm=512):
    """Pallas Treat_Linear.forward (act='relu', istreat=1, isbias=1)."""
    n, ind_p1 = x.shape                      # ind_p1 = 1 + ind
    outd = weight.shape[1]

    # Augmented weight: row 0 = treat_weight, rows 1: = weight.
    w_aug = jnp.concatenate(
        [treat_weight.reshape(1, outd).astype(weight.dtype), weight], axis=0
    ).astype(compute_dtype)                  # (1+ind, outd), resident in VMEM
    bias2d = bias.reshape(1, outd).astype(jnp.float32)

    out_cols = outd if islastlayer else 1 + outd

    # Batch tile: multiple of 8 sublanes, no bigger than (padded) N.
    tm = max(8, min(int(tm), ((n + 7) // 8) * 8))
    n_pad = ((n + tm - 1) // tm) * tm
    x_in = x.astype(jnp.float32)
    if n_pad != n:
        x_in = jnp.pad(x_in, ((0, n_pad - n), (0, 0)))
    grid = (n_pad // tm,)

    w_bytes = jnp.dtype(compute_dtype).itemsize
    vmem_bytes = int(
        2 * tm * ind_p1 * 4            # x tile, double-buffered
        + 2 * tm * out_cols * 4        # out tile, double-buffered
        + 2 * ind_p1 * outd * w_bytes  # resident weights
        + 2 * outd * 4                 # resident bias
        + (4 << 20))                   # headroom
    vmem_bytes = min(vmem_bytes, 48 << 20)   # stays under v7x's 64 MiB VMEM

    cost = pl.CostEstimate(
        flops=2 * n_pad * ind_p1 * outd,
        transcendentals=0,
        bytes_accessed=(n_pad * ind_p1 * 4 + ind_p1 * outd * w_bytes
                        + outd * 4 + n_pad * out_cols * 4),
    )

    kernel = functools.partial(
        _treat_linear_kernel,
        islastlayer=bool(islastlayer),
        compute_dtype=compute_dtype,
    )

    out = pl.pallas_call(
        kernel,
        out_shape=jax.ShapeDtypeStruct((n_pad, out_cols), jnp.float32),
        grid_spec=pl.GridSpec(
            grid=grid,
            in_specs=[
                pl.BlockSpec((tm, ind_p1), lambda i: (i, 0)),     # x tile
                pl.BlockSpec((ind_p1, outd), lambda i: (0, 0)),   # W_aug (resident)
                pl.BlockSpec((1, outd), lambda i: (0, 0)),        # bias (resident)
            ],
            out_specs=pl.BlockSpec((tm, out_cols), lambda i: (i, 0)),
        ),
        compiler_params=pltpu.CompilerParams(
            dimension_semantics=("parallel",),
            vmem_limit_bytes=vmem_bytes,
        ),
        cost_estimate=cost,
    )(x_in, w_aug, bias2d)

    if n_pad != n:
        out = out[:n]
    return out


def _reference(x, weight, treat_weight, bias, islastlayer=0):
    x_feature = x[:, 1:]
    x_treat = x[:, 0:1]
    out = x_feature @ weight
    out = out + x_treat @ treat_weight
    out = out + bias
    out = jnp.maximum(out, 0.0)
    if not islastlayer:
        out = jnp.concatenate([x_treat, out], axis=1)
    return out


if __name__ == "__main__":
    # Small shapes consistent with the module: batch=8, ind=32, outd=32.
    N, IND, OUTD = 8, 32, 32

    key = jax.random.PRNGKey(0)
    kx, kw, ktw, kb = jax.random.split(key, 4)

    # torch.rand -> U[0, 1) deterministic init
    x = jax.random.uniform(kx, (N, 1 + IND), dtype=jnp.float32)
    weight = jax.random.uniform(kw, (IND, OUTD), dtype=jnp.float32)
    treat_weight = jax.random.uniform(ktw, (1, OUTD), dtype=jnp.float32)
    bias = jax.random.uniform(kb, (OUTD,), dtype=jnp.float32)

    ref = _reference(x, weight, treat_weight, bias, islastlayer=0)

    # f32 path: exact match vs reference.
    out_f32 = jax.block_until_ready(
        treat_linear_forward(x, weight, treat_weight, bias,
                             islastlayer=0, compute_dtype=jnp.float32))
    assert out_f32.shape == (N, 1 + OUTD), out_f32.shape
    assert jnp.allclose(out_f32, ref, atol=1e-5, rtol=1e-5), "f32 mismatch vs reference"

    # bf16 MXU-operand path (bandwidth optimization for v6e/v7x): looser tol.
    out_bf16 = jax.block_until_ready(
        treat_linear_forward(x, weight, treat_weight, bias,
                             islastlayer=0, compute_dtype=jnp.bfloat16))
    assert out_bf16.shape == (N, 1 + OUTD)
    assert jnp.allclose(out_bf16, ref, atol=5e-2, rtol=5e-2), "bf16 mismatch vs reference"

    # islastlayer=1 path (no treat column re-attach).
    ref_last = _reference(x, weight, treat_weight, bias, islastlayer=1)
    out_last = jax.block_until_ready(
        treat_linear_forward(x, weight, treat_weight, bias,
                             islastlayer=1, compute_dtype=jnp.float32))
    assert out_last.shape == (N, OUTD)
    assert jnp.allclose(out_last, ref_last, atol=1e-5, rtol=1e-5), "lastlayer mismatch"

    print("KERNEL_OK")
</pallas_src>

<mosaic_0001>
module attributes {stable_mosaic.version = 11 : i64} {
  func.func @_treat_linear_kernel(%arg0: i32, %arg1: memref<8x33xf32, #tpu.memory_space<vmem>>, %arg2: memref<33x32xf32, #tpu.memory_space<vmem>>, %arg3: memref<1x32xf32, #tpu.memory_space<vmem>>, %arg4: memref<8x33xf32, #tpu.memory_space<vmem>>) attributes {dimension_semantics = [#tpu.dimension_semantics<parallel>], iteration_bounds = array<i64: 1>, scalar_prefetch = 0 : i64, scratch_operands = 0 : i64, tpu.core_type = #tpu.core_type<tc>, window_params = [{transform_indices = @transform_0, window_bounds = array<i64: 8, 33>}, {pipeline_mode = #tpu.pipeline_mode<synchronous>, transform_indices = @transform_1, window_bounds = array<i64: 33, 32>}, {pipeline_mode = #tpu.pipeline_mode<synchronous>, transform_indices = @transform_2, window_bounds = array<i64: 1, 32>}, {transform_indices = @transform_3, window_bounds = array<i64: 8, 33>}]} {
    %c0 = arith.constant 0 : index
    %c0_0 = arith.constant 0 : index
    %0 = vector.load %arg1[%c0, %c0_0] : memref<8x33xf32, #tpu.memory_space<vmem>>, vector<8x33xf32>
    %c0_1 = arith.constant 0 : index
    %c0_2 = arith.constant 0 : index
    %1 = vector.load %arg2[%c0_1, %c0_2] : memref<33x32xf32, #tpu.memory_space<vmem>>, vector<33x32xf32>
    %cst = arith.constant dense<0.000000e+00> : vector<8x32xf32>
    %2 = tpu.matmul %0, %1, %cst {dimension_numbers = #tpu.dot_dimension_numbers<[1], [0], [0], [1], [0, 0, 1, 1], [], []>} : vector<8x33xf32>, vector<33x32xf32>, vector<8x32xf32> -> vector<8x32xf32>
    %c0_3 = arith.constant 0 : index
    %c0_4 = arith.constant 0 : index
    %3 = vector.load %arg3[%c0_3, %c0_4] : memref<1x32xf32, #tpu.memory_space<vmem>>, vector<1x32xf32>
    %4 = vector.broadcast %3 : vector<1x32xf32> to vector<8x32xf32>
    %5 = arith.addf %2, %4 : vector<8x32xf32>
    %cst_5 = arith.constant 0.000000e+00 : f32
    %6 = vector.broadcast %cst_5 : f32 to vector<8x32xf32>
    %7 = arith.maximumf %5, %6 : vector<8x32xf32>
    %8 = vector.extract_strided_slice %0 {offsets = [0, 0], sizes = [8, 1], strides = [1, 1]} : vector<8x33xf32> to vector<8x1xf32>
    %9 = tpu.concatenate %8, %7 in 1 : vector<8x1xf32>, vector<8x32xf32> -> vector<8x33xf32>
    %c0_6 = arith.constant 0 : index
    %c0_7 = arith.constant 0 : index
    %10 = vector.load %arg4[%c0_6, %c0_7] : memref<8x33xf32, #tpu.memory_space<vmem>>, vector<8x33xf32>
    tpu.vector_store %arg4[%c0_6, %c0_7], %9 {strides = array<i32>} : memref<8x33xf32, #tpu.memory_space<vmem>>, vector<8x33xf32>,
    return
  }
  func.func @transform_0(%arg0: i32) -> (i32, i32) {
    %c0_i32 = arith.constant 0 : i32
    %c0_i32_0 = arith.constant 0 : i32
    return %arg0, %c0_i32 : i32, i32
  }
  func.func @transform_1(%arg0: i32) -> (i32, i32) {
    %c0_i32 = arith.constant 0 : i32
    %c0_i32_0 = arith.constant 0 : i32
    %c0_i32_1 = arith.constant 0 : i32
    return %c0_i32, %c0_i32_0 : i32, i32
  }
  func.func @transform_2(%arg0: i32) -> (i32, i32) {
    %c0_i32 = arith.constant 0 : i32
    %c0_i32_0 = arith.constant 0 : i32
    %c0_i32_1 = arith.constant 0 : i32
    return %c0_i32, %c0_i32_0 : i32, i32
  }
  func.func @transform_3(%arg0: i32) -> (i32, i32) {
    %c0_i32 = arith.constant 0 : i32
    %c0_i32_0 = arith.constant 0 : i32
    return %arg0, %c0_i32 : i32, i32
  }
}

</mosaic_0001>

<llo_original>
// kernel: tpu_custom_call.1
$region0: #{tpu_custom_call.1}
  #allocation0 [shape = 'u32[]', space=smem, size = 0x4, offset = 0x4, fixed_abs, tag = 'smem constant byte address 0x4 - core index']
  #allocation1 [shape = 'u32[144,128]{1,0:T(1,128)}', space=vmem, size = 0x12000, scoped, tag = 'internal scratch']
  %s0 = inlined_call_operand.vmem [shape: f32[8,33], index: 0, kind: input, shape index: {}]
  %s1 = inlined_call_operand.vmem [shape: f32[33,32], index: 1, kind: input, shape index: {}]
  %s2 = inlined_call_operand.vmem [shape: f32[1,32], index: 2, kind: input, shape index: {}]
  %s3 = inlined_call_operand.hbm [shape: f32[8,33], index: 3, kind: output, shape index: {}]
  %s4 = sld [smem:[#allocation0]]
  $region22: #{tpu_custom_call.1} parent=0
    _
  %s6 = ssub.s32 1, %s4
  %s7 = scalar_select 0, %s6, %s4
  $region1: #{tpu_custom_call.1} parent=0
    #allocation2 [shape = 'u8[4096]{0}', space=vmem, size = 0x1000, scoped, tag = 'output window, operand 0, single buffered']
    #allocation3 [shape = 's32[1]{0}', space=sflag, size = 0x4, scoped, tag = 'scoped memory for tpu_custom_call.1']
    %8 = vsyncpa [#allocation3], 0
    // Predicated region
    $region2: #{tpu_custom_call.1} parent=1 // pred_check
      _
    $region3: #{tpu_custom_call.1} parent=1 // pred_check_branch
      %10 = sbr.rel (0) target = $region5
    $region4: #{tpu_custom_call.1} parent=1 // pred_region
      _
    $region5: #{tpu_custom_call.1} parent=1 // pred_fallthru
      _
    // Predicated region
    $region6: #{tpu_custom_call.1} parent=1 // pred_check
      _
    $region7: #{tpu_custom_call.1} parent=1 // pred_check_branch
      %12 = sbr.rel (0) target = $region9
    $region8: #{tpu_custom_call.1} parent=1 // pred_region
      _
    $region9: #{tpu_custom_call.1} parent=1 // pred_fallthru
      _
    // Predicated region
    $region10: #{tpu_custom_call.1} parent=1 // pred_check
      _
    $region11: #{tpu_custom_call.1} parent=1 // pred_check_branch
      %14 = sbr.rel (0) target = $region13
    $region12: #{tpu_custom_call.1} parent=1 // pred_region
      _
    $region13: #{tpu_custom_call.1} parent=1 // pred_fallthru
      _
    %v15 = vld [vmem:[%s0] sm:$0xff]
    %v16 = vld [vmem:[%s1] sm:$0xff]
    %v17 = vld [vmem:[%s1 + $0x8] sm:$0xff]
    %v18 = vld [vmem:[%s1 + $0x10] sm:$0xff]
    %v19 = vld [vmem:[%s1 + $0x18] sm:$0xff]
    %v20 = vld [vmem:[%s1 + $0x20] sm:$0x1]
    %v21 = vld [vmem:[%s2] sm:$0x1]
    %v23 = vlaneseq
    %v24 = vshrl.u32 %v23, 7
    %v25 = vsub.s32 0, %v24
    %v26 = vrot.slane %v21, %v25
    %vm28 = vcmask 269312
    %v30 = vsel %vm28, %v15, 0
    %vm32 = vcmask 1040384
    %v34 = vsel %vm32, %v20, 0
    %36 = vmatprep.subr.mxu0 0.0
    %37 = vmatpush1.msra.mxu0 0.0
    %38 = vmatprep.subr.mxu0 0.0
    %39 = vmatpush1.msra.mxu0 0.0
    %40 = vmatprep.subr.mxu0 0.0
    %41 = vmatpush1.msra.mxu0 0.0
    %42 = vmatprep.subr.mxu0 0.0
    %43 = vmatpush1.msra.mxu0 0.0
    %44 = vmatprep.subr.mxu0 0.0
    %45 = vmatpush1.msra.mxu0 0.0
    %46 = vmatprep.subr.mxu0 0.0
    %47 = vmatpush1.msra.mxu0 0.0
    %48 = vmatprep.subr.mxu0 0.0
    %49 = vmatpush1.msra.mxu0 0.0
    %50 = vmatprep.subr.mxu0 0.0
    %51 = vmatpush1.msra.mxu0 0.0
    %52 = vmatprep.subr.mxu0 0.0
    %53 = vmatpush1.msra.mxu0 0.0
    %54 = vmatprep.subr.mxu0 0.0
    %55 = vmatpush1.msra.mxu0 0.0
    %56 = vmatprep.subr.mxu0 0.0
    %57 = vmatpush1.msra.mxu0 0.0
    %58 = vmatprep.subr.mxu0 0.0
    %59 = vmatpush1.msra.mxu0 %v34
    %60 = vmatprep.subr.mxu0 0.0
    %61 = vmatpush1.msra.mxu0 %v19
    %62 = vmatprep.subr.mxu0 0.0
    %63 = vmatpush1.msra.mxu0 %v18
    %64 = vmatprep.subr.mxu0 0.0
    %65 = vmatpush1.msra.mxu0 %v17
    %66 = vmatprep.subr.mxu0 0.0
    %67 = vmatpush1.msra.mxu0 %v16
    %68 = vmatprep.subr.mxu0 0.0
    %69 = vmatpush2.msra.mxu0 0.0
    %70 = vmatprep.subr.mxu0 0.0
    %71 = vmatpush2.msra.mxu0 0.0
    %72 = vmatprep.subr.mxu0 0.0
    %73 = vmatpush2.msra.mxu0 0.0
    %74 = vmatprep.subr.mxu0 0.0
    %75 = vmatpush2.msra.mxu0 0.0
    %76 = vmatprep.subr.mxu0 0.0
    %77 = vmatpush2.msra.mxu0 0.0
    %78 = vmatprep.subr.mxu0 0.0
    %79 = vmatpush2.msra.mxu0 0.0
    %80 = vmatprep.subr.mxu0 0.0
    %81 = vmatpush2.msra.mxu0 0.0
    %82 = vmatprep.subr.mxu0 0.0
    %83 = vmatpush2.msra.mxu0 0.0
    %84 = vmatprep.subr.mxu0 0.0
    %85 = vmatpush2.msra.mxu0 0.0
    %86 = vmatprep.subr.mxu0 0.0
    %87 = vmatpush2.msra.mxu0 0.0
    %88 = vmatprep.subr.mxu0 0.0
    %89 = vmatpush2.msra.mxu0 0.0
    %90 = vmatprep.subr.mxu0 0.0
    %91 = vmatpush2.msra.mxu0 0.0
    %92 = vmatprep.subr.mxu0 0.0
    %93 = vmatpush2.msra.mxu0 0.0
    %94 = vmatprep.subr.mxu0 0.0
    %95 = vmatpush2.msra.mxu0 0.0
    %96 = vmatprep.subr.mxu0 0.0
    %97 = vmatpush2.msra.mxu0 0.0
    %98 = vmatprep.subr.mxu0 0.0
    %99 = vmatpush2.msra.mxu0 0.0
    %100 = vmatprep.mubr.f32.mxu0 0.0
    %101 = vmatmul.mubr.f32.gmra.mxu0 %v30
    %v102 = vpop.f32.mrf.mxu0
    %v103 = vadd.f32 %v26, %v102
    %v104 = vpop.f32.mrf.mxu0
    %105 = vdwg.mxu0
    %v106 = vmax.f32 %v103, 0.0
    %108 = vrot.lane.b32.xlu0 %v106, 1
    %v109 = vpop.permute.xlu0 %108
    %vm111 = vcmask 7168
    %v112 = vsel %vm111, %v15, %v109
    %113 = vst.msk [vmem:[#allocation2] sm:$0xff] %vm28, %v112
    // Predicated region
    $region14: #{tpu_custom_call.1} parent=1 // pred_check
      _
    $region15: #{tpu_custom_call.1} parent=1 // pred_check_branch
      %115 = sbr.rel (0) target = $region17
    $region16: #{tpu_custom_call.1} parent=1 // pred_region
      %s117 = ssub.s32 128, 128
      %118 = vsyncadd [#allocation3], %s117
      %s120 = sshll.u32 [#allocation2], 4
      %s121 = int_to_ptr.vmem [resolvable:$true] %s120
      %123 = dma.vmem_to_hbm [thread:$0]  %s121, 128, %s3, [#allocation3]
    $region17: #{tpu_custom_call.1} parent=1 // pred_fallthru
      _
    // Predicated region
    $region18: #{tpu_custom_call.1} parent=1 // pred_check
      _
    $region19: #{tpu_custom_call.1} parent=1 // pred_check_branch
      %125 = sbr.rel (0) target = $region21
    $region20: #{tpu_custom_call.1} parent=1 // pred_region
      %126 = dma.done [#allocation3], 128
    $region21: #{tpu_custom_call.1} parent=1 // pred_fallthru
      _
    %127 = vsyncpa [#allocation3], 1

</llo_original>
